<compile_context>
chip_gen: v6e
topology: v6e:2x2x1
jax: 0.10.0
libtpu: 0.0.40
codegen_flags: <defaults>
</compile_context>

<pallas_src>
import math

import jax
import jax.numpy as jnp
from jax.experimental import pallas as pl
from jax.experimental.pallas import tpu as pltpu


def _dst_kernel(x_ref, alpha_ref, o_ref):
    # out = max(x - alpha, 0); (TB, TL) - (1, TL) broadcast, pure VPU work.
    o_ref[...] = jnp.maximum(x_ref[...] - alpha_ref[...], 0.0)


def _choose_fold(B, A, target_lanes):
    """Largest zero-copy fold g: (g*A) % 128 == 0, B % g == 0, g*A <~ target.

    Folding g batch rows into the lane axis makes the kernel's last dim a
    multiple of 128 (unmasked vector stores) without any padding, as long as
    g divides the batch exactly (then the fold is a free reshape).
    """
    g_unit = 128 // math.gcd(A, 128)      # smallest g with (g*A) % 128 == 0
    cap = max(target_lanes, g_unit * A)
    best, m = 1, 1
    while g_unit * m * A <= cap and g_unit * m <= max(B, 1):
        g = g_unit * m
        if B % g == 0:
            best = g
        m *= 2
    return best


def dynamical_soft_thresholding(
    x,
    alpha,
    *,
    target_lanes=1024,           # aim for >= this many lanes per block row
    tile_budget_bytes=4 << 20,   # per in/out tile (Pallas double-buffers them)
    vmem_limit_bytes=32 << 20,
):
    """relu(x - alpha) with alpha broadcast over x's leading dims.

    x:     (*lead, *alpha.shape)
    alpha: (N,) or (H, W)
    """
    a_shape = alpha.shape
    assert x.shape[x.ndim - len(a_shape):] == tuple(a_shape), (
        f"trailing dims of x {x.shape} must match alpha {a_shape}")

    lead_shape = x.shape[:x.ndim - len(a_shape)]
    B = math.prod(lead_shape) if lead_shape else 1
    A = math.prod(a_shape)
    itemsize = jnp.dtype(x.dtype).itemsize
    alpha = alpha.astype(x.dtype)

    # ---- zero-copy fold: g batch rows into the lane axis, L = g*A ----
    g = _choose_fold(B, A, target_lanes)
    rows = B // g
    L = g * A

    # ---- tile shapes: lane tile TL (mult of 128 when split), row tile TB ----
    sub = 8 * max(1, 4 // itemsize)           # 8 f32 / 16 bf16 / 32 int8 sublanes
    max_tile_elems = max(1, tile_budget_bytes // itemsize)
    if L <= max_tile_elems:
        TL = L                                # full lane extent (legal even if <128)
    else:
        TL = max(128, min(L, ((max_tile_elems // sub) // 128) * 128))
    tb_cap = max(1, max_tile_elems // TL)
    if tb_cap >= rows:
        TB = rows                             # single row-block == full dim
    else:
        TB = max(sub, (tb_cap // sub) * sub)  # multiple of sublane count
    grid = (pl.cdiv(rows, TB), pl.cdiv(L, TL))

    # Double-buffered x/out tiles + alpha block must fit the VMEM window.
    tile_bytes = TB * TL * itemsize
    vmem_limit_bytes = max(vmem_limit_bytes,
                           4 * tile_bytes + 2 * TL * itemsize + (1 << 20))

    # ---- wrapper-side plumbing: reshapes only (no pad / no output slice) ----
    x2 = x.reshape(rows, L)
    a_flat = alpha.reshape(-1)
    a2 = (jnp.tile(a_flat, g) if g > 1 else a_flat).reshape(1, L)

    out2 = pl.pallas_call(
        _dst_kernel,
        out_shape=jax.ShapeDtypeStruct((rows, L), x.dtype),
        grid_spec=pl.GridSpec(
            grid=grid,
            in_specs=[
                pl.BlockSpec((TB, TL), lambda i, j: (i, j)),   # x tile
                pl.BlockSpec((1, TL), lambda i, j: (0, j)),    # alpha slab
            ],
            out_specs=pl.BlockSpec((TB, TL), lambda i, j: (i, j)),
        ),
        compiler_params=pltpu.CompilerParams(
            dimension_semantics=("parallel", "parallel"),
            vmem_limit_bytes=vmem_limit_bytes,
        ),
    )(x2, a2)

    return out2.reshape(x.shape)


def init_alpha(no_units):
    """Deterministic parameter init mirroring the PyTorch __init__ (alpha=None)."""
    if len(no_units) == 1:
        # 'one' mode: alpha = 0.01 expanded to shape (N,)
        return jnp.full((no_units[0],), 0.01, dtype=jnp.float32)
    elif len(no_units) == 2:
        # 'multi' mode: zeros([H, W]) + 0.01
        return jnp.full((no_units[0], no_units[1]), 0.01, dtype=jnp.float32)
    else:
        raise ValueError("The expected second arguments is the list of size 1 or 2.")


if __name__ == "__main__":
    key = jax.random.PRNGKey(0)
    k1, k2, k3, k4, k5, k6 = jax.random.split(key, 6)

    # --- 'one' mode: x (batch=2, hidden=32), alpha (32,) -> full-dim block ---
    alpha1 = init_alpha([32])
    x1 = jax.random.normal(k1, (2, 32), dtype=jnp.float32)
    y1 = jax.block_until_ready(dynamical_soft_thresholding(x1, alpha1))
    ref1 = jnp.maximum(x1 - alpha1[None, :], 0.0)
    assert jnp.allclose(y1, ref1, atol=1e-6), "mode 'one' mismatch"

    # --- 'multi' mode: x (batch=2, 8, 16), alpha (8, 16) -> 128-lane fold ---
    alpha2 = init_alpha([8, 16])
    x2 = jax.random.normal(k2, (2, 8, 16), dtype=jnp.float32)
    y2 = jax.block_until_ready(dynamical_soft_thresholding(x2, alpha2))
    ref2 = jnp.maximum(x2 - alpha2[None, :, :], 0.0)
    assert jnp.allclose(y2, ref2, atol=1e-6), "mode 'multi' mismatch"

    # --- ragged multi-block row path (no fold divides 70 -> masked lanes) ---
    alpha3 = init_alpha([32])
    x3 = jax.random.normal(k3, (70, 32), dtype=jnp.float32)
    y3 = jax.block_until_ready(
        dynamical_soft_thresholding(x3, alpha3,
                                    target_lanes=128, tile_budget_bytes=4096))
    ref3 = jnp.maximum(x3 - alpha3[None, :], 0.0)
    assert jnp.allclose(y3, ref3, atol=1e-6), "ragged-row path mismatch"

    # --- zero-copy fold path: batch divisible, lanes folded to 1024 ---
    alpha4 = init_alpha([32])
    x4 = jax.random.normal(k4, (64, 32), dtype=jnp.float32)
    y4 = jax.block_until_ready(dynamical_soft_thresholding(x4, alpha4))
    ref4 = jnp.maximum(x4 - alpha4[None, :], 0.0)
    assert jnp.allclose(y4, ref4, atol=1e-6), "fold path mismatch"

    # --- fold + ragged row blocks (35 rows of 512 lanes, TB=8) ---
    alpha5 = init_alpha([16, 16])
    x5 = jax.random.normal(k5, (70, 16, 16), dtype=jnp.float32)
    y5 = jax.block_until_ready(
        dynamical_soft_thresholding(x5, alpha5, tile_budget_bytes=8192))
    ref5 = jnp.maximum(x5 - alpha5[None, :, :], 0.0)
    assert jnp.allclose(y5, ref5, atol=1e-6), "fold+ragged path mismatch"

    # --- wide alpha -> lane-axis tiling (2D grid over lanes) ---
    alpha6 = init_alpha([2048])
    x6 = jax.random.normal(k6, (8, 2048), dtype=jnp.float32)
    y6 = jax.block_until_ready(
        dynamical_soft_thresholding(x6, alpha6, tile_budget_bytes=4096))
    ref6 = jnp.maximum(x6 - alpha6[None, :], 0.0)
    assert jnp.allclose(y6, ref6, atol=1e-6), "lane-tiled path mismatch"

    print("KERNEL_OK")
</pallas_src>

<mosaic_0001>
module attributes {stable_mosaic.version = 11 : i64} {
  func.func @_dst_kernel(%arg0: i32, %arg1: i32, %arg2: memref<2x32xf32, #tpu.memory_space<vmem>>, %arg3: memref<1x32xf32, #tpu.memory_space<vmem>>, %arg4: memref<2x32xf32, #tpu.memory_space<vmem>>) attributes {dimension_semantics = [#tpu.dimension_semantics<parallel>, #tpu.dimension_semantics<parallel>], iteration_bounds = array<i64: 1, 1>, scalar_prefetch = 0 : i64, scratch_operands = 0 : i64, tpu.core_type = #tpu.core_type<tc>, window_params = [{transform_indices = @transform_0, window_bounds = array<i64: 2, 32>}, {transform_indices = @transform_1, window_bounds = array<i64: 1, 32>}, {transform_indices = @transform_2, window_bounds = array<i64: 2, 32>}]} {
    %c0 = arith.constant 0 : index
    %c0_0 = arith.constant 0 : index
    %0 = vector.load %arg2[%c0, %c0_0] : memref<2x32xf32, #tpu.memory_space<vmem>>, vector<2x32xf32>
    %c0_1 = arith.constant 0 : index
    %c0_2 = arith.constant 0 : index
    %1 = vector.load %arg3[%c0_1, %c0_2] : memref<1x32xf32, #tpu.memory_space<vmem>>, vector<1x32xf32>
    %2 = vector.broadcast %1 : vector<1x32xf32> to vector<2x32xf32>
    %3 = arith.subf %0, %2 : vector<2x32xf32>
    %cst = arith.constant 0.000000e+00 : f32
    %4 = vector.broadcast %cst : f32 to vector<2x32xf32>
    %5 = arith.maximumf %3, %4 : vector<2x32xf32>
    %c0_3 = arith.constant 0 : index
    %c0_4 = arith.constant 0 : index
    %6 = vector.load %arg4[%c0_3, %c0_4] : memref<2x32xf32, #tpu.memory_space<vmem>>, vector<2x32xf32>
    tpu.vector_store %arg4[%c0_3, %c0_4], %5 {strides = array<i32>} : memref<2x32xf32, #tpu.memory_space<vmem>>, vector<2x32xf32>,
    return
  }
  func.func @transform_0(%arg0: i32, %arg1: i32) -> (i32, i32) {
    %c0_i32 = arith.constant 0 : i32
    return %arg0, %arg1 : i32, i32
  }
  func.func @transform_1(%arg0: i32, %arg1: i32) -> (i32, i32) {
    %c0_i32 = arith.constant 0 : i32
    %c0_i32_0 = arith.constant 0 : i32
    return %c0_i32, %arg1 : i32, i32
  }
  func.func @transform_2(%arg0: i32, %arg1: i32) -> (i32, i32) {
    %c0_i32 = arith.constant 0 : i32
    return %arg0, %arg1 : i32, i32
  }
}

</mosaic_0001>

<llo_original>
// kernel: tpu_custom_call.1
$region0: #{tpu_custom_call.1}
  #allocation0 [shape = 'u32[]', space=smem, size = 0x4, offset = 0x4, fixed_abs, tag = 'smem constant byte address 0x4 - core index']
  #allocation1 [shape = 'u32[144,128]{1,0:T(1,128)}', space=vmem, size = 0x12000, scoped, tag = 'internal scratch']
  %s0 = inlined_call_operand.hbm [shape: f32[2,32], index: 0, kind: input, shape index: {}]
  %s1 = inlined_call_operand.vmem [shape: f32[1,32], index: 1, kind: input, shape index: {}]
  %s2 = inlined_call_operand.hbm [shape: f32[2,32], index: 2, kind: output, shape index: {}]
  %s3 = sld [smem:[#allocation0]]
  $region22: #{tpu_custom_call.1} parent=0
    _
  %s5 = ssub.s32 1, %s3
  %s6 = scalar_select 0, %s5, %s3
  $region1: #{tpu_custom_call.1} parent=0
    #allocation2 [shape = 'u8[1024]{0}', space=vmem, size = 0x400, scoped, tag = 'input window, operand 0, single buffered']
    #allocation3 [shape = 's32[1]{0}', space=sflag, size = 0x4, scoped, tag = 'scoped memory for tpu_custom_call.1']
    #allocation4 [shape = 's32[1]{0}', space=sflag, size = 0x4, scoped, tag = 'scoped memory for tpu_custom_call.1']
    #allocation5 [shape = 'u8[1024]{0}', space=vmem, size = 0x400, scoped, tag = 'output window, operand 0, single buffered']
    %7 = vsyncpa [#allocation3], 0
    %8 = vsyncpa [#allocation4], 0
    // Predicated region
    $region2: #{tpu_custom_call.1} parent=1 // pred_check
      _
    $region3: #{tpu_custom_call.1} parent=1 // pred_check_branch
      %10 = sbr.rel (0) target = $region5
    $region4: #{tpu_custom_call.1} parent=1 // pred_region
      %s12 = ssub.s32 32, 32
      %13 = vsyncadd [#allocation3], %s12
      %s15 = sshll.u32 [#allocation2], 4
      %s16 = int_to_ptr.vmem [resolvable:$true] %s15
      %18 = dma.hbm_to_vmem [thread:$0]  %s0, 32, %s16, [#allocation3]
    $region5: #{tpu_custom_call.1} parent=1 // pred_fallthru
      _
    // Predicated region
    $region6: #{tpu_custom_call.1} parent=1 // pred_check
      _
    $region7: #{tpu_custom_call.1} parent=1 // pred_check_branch
      %20 = sbr.rel (0) target = $region9
    $region8: #{tpu_custom_call.1} parent=1 // pred_region
      _
    $region9: #{tpu_custom_call.1} parent=1 // pred_fallthru
      _
    // Predicated region
    $region10: #{tpu_custom_call.1} parent=1 // pred_check
      _
    $region11: #{tpu_custom_call.1} parent=1 // pred_check_branch
      %22 = sbr.rel (0) target = $region13
    $region12: #{tpu_custom_call.1} parent=1 // pred_region
      %23 = dma.done [#allocation3], 32
    $region13: #{tpu_custom_call.1} parent=1 // pred_fallthru
      _
    %v24 = vld [vmem:[#allocation2] sm:$0x3]
    %v25 = vld [vmem:[%s1] sm:$0x1]
    %v27 = vlaneseq
    %v28 = vshrl.u32 %v27, 7
    %v29 = vsub.s32 0, %v28
    %v30 = vrot.slane %v25, %v29
    %v32 = vsub.f32 %v24, %v30
    %v33 = vmax.f32 %v32, 0.0
    %vm34 = vcmask 254976
    %35 = vst.msk [vmem:[#allocation5] sm:$0x3] %vm34, %v33
    // Predicated region
    $region14: #{tpu_custom_call.1} parent=1 // pred_check
      _
    $region15: #{tpu_custom_call.1} parent=1 // pred_check_branch
      %37 = sbr.rel (0) target = $region17
    $region16: #{tpu_custom_call.1} parent=1 // pred_region
      %s39 = ssub.s32 32, 32
      %40 = vsyncadd [#allocation4], %s39
      %s42 = sshll.u32 [#allocation5], 4
      %s43 = int_to_ptr.vmem [resolvable:$true] %s42
      %45 = dma.vmem_to_hbm [thread:$0]  %s43, 32, %s2, [#allocation4]
    $region17: #{tpu_custom_call.1} parent=1 // pred_fallthru
      _
    // Predicated region
    $region18: #{tpu_custom_call.1} parent=1 // pred_check
      _
    $region19: #{tpu_custom_call.1} parent=1 // pred_check_branch
      %47 = sbr.rel (0) target = $region21
    $region20: #{tpu_custom_call.1} parent=1 // pred_region
      %48 = dma.done [#allocation4], 32
    $region21: #{tpu_custom_call.1} parent=1 // pred_fallthru
      _
    %49 = vsyncpa [#allocation3], 1
    %50 = vsyncpa [#allocation4], 1

</llo_original>
